<compile_context>
chip_gen: v5e
topology: v5e:2x2
jax: 0.10.0
libtpu: 0.0.40
codegen_flags: <defaults>
</compile_context>

<pallas_src>
import functools

import numpy as np
import jax
import jax.numpy as jnp
from jax import lax
from jax.experimental import pallas as pl
from jax.experimental.pallas import tpu as pltpu


# ---------------------------------------------------------------------------
# in-kernel helpers (pure jnp, traced inside the Pallas body)
# ---------------------------------------------------------------------------
def _euclid(x, y):
    """||x_i - y_j||^2 distance matrix, [Nx, D] x [Ny, D] -> [Nx, Ny].

    x^2 / y^2 row norms are folded onto the (idle) MXU so no XLU transpose or
    lane-reduce is issued; result is clamped at 0 to kill cancellation
    negatives (the reference's sum-of-squares is exactly nonnegative).
    """
    d = x.shape[1]
    ones_col = jnp.ones((d, 1), jnp.float32)
    ones_row = jnp.ones((1, d), jnp.float32)
    x2 = lax.dot_general(x * x, ones_col, (((1,), (0,)), ((), ())),
                         preferred_element_type=jnp.float32)           # [Nx, 1]
    y2 = lax.dot_general(ones_row, y * y, (((1,), (1,)), ((), ())),
                         preferred_element_type=jnp.float32)           # [1, Ny]
    xy = lax.dot_general(x, y, (((1,), (1,)), ((), ())),
                         preferred_element_type=jnp.float32)           # [Nx, Ny]
    return jnp.maximum(x2 + y2 - 2.0 * xy, 0.0)


def _log_softmax(x):
    m = jnp.max(x, axis=1, keepdims=True)
    s = x - m
    return s - jnp.log(jnp.sum(jnp.exp(s), axis=1, keepdims=True))


def _log_softmax_and_softmax(x):
    """Single exp pass -> (log_softmax, softmax); reciprocal goes to the EUP."""
    m = jnp.max(x, axis=1, keepdims=True)
    s = x - m
    e = jnp.exp(s)
    sum_e = jnp.sum(e, axis=1, keepdims=True)
    return s - jnp.log(sum_e), e * pl.reciprocal(sum_e, approx=True)


def _entropy(p):
    """-sum(p * log(p + 1e-3), -1), clamped at 0.  Returns [N, 1]."""
    ent = -jnp.sum(p * jnp.log(p + 0.001), axis=1, keepdims=True)
    return jnp.maximum(ent, 0.0)


def _mean2(x):
    """Full mean of a 2-D array, returned as a (1, 1) array."""
    s = jnp.sum(jnp.sum(x, axis=1, keepdims=True), axis=0, keepdims=True)
    return s / float(x.shape[0] * x.shape[1])


# ---------------------------------------------------------------------------
# the Pallas kernel: one grid step == one few-shot episode
# ---------------------------------------------------------------------------
def loss_kernel(proto_ref, query_ref, oproto_ref, samp_ref, islb_ref,
                label_ref, glabel_ref, out_ref, *, support):
    proto = proto_ref[...].astype(jnp.float32)     # [N, D]    class prototypes
    query = query_ref[...].astype(jnp.float32)     # [NQ, D]   query representations
    oproto = oproto_ref[...].astype(jnp.float32)   # [N, D]    original prototypes
    samp = samp_ref[...].astype(jnp.float32)       # [NS, D]   flattened sampled data
    islb = islb_ref[...].astype(jnp.float32)       # [T, N]    ISLB logits
    label = label_ref[...].astype(jnp.float32)     # [T, N]    one-hot labels
    glabel = glabel_ref[...].astype(jnp.float32)   # [NS, N]   generated one-hot labels

    # --- ISLB classification loss (one exp pass; exponentiate query rows only)
    m = jnp.max(islb, axis=1, keepdims=True)
    s = islb - m
    e = jnp.exp(s)
    sum_e = jnp.sum(e, axis=1, keepdims=True)
    islb_log = s - jnp.log(sum_e)                               # log_softmax(ISLB)
    islb_loss = _mean2(-islb_log * label)                       # (1,1)
    qcp = e[support:, :] * pl.reciprocal(sum_e[support:, :], approx=True)  # [NQ,N]

    # --- query prototypical loss -------------------------------------------
    dists = _euclid(query, proto)                               # [NQ, N]
    log_prob, prob = _log_softmax_and_softmax(-dists)           # [NQ, N] each
    q_labels = label[support:, :]                               # [NQ, N]
    query_loss = _mean2(-q_labels * log_prob)                   # (1,1)

    # --- sampled-data loss ---------------------------------------------------
    gen_log_prob = _log_softmax(-_euclid(samp, oproto))         # [NS, N]
    sample_loss = _mean2(-glabel * gen_log_prob)                # (1,1)

    # --- prototype-separation ("pro") loss -----------------------------------
    ent_p = _entropy(prob)                                      # [NQ, 1]
    ent_q = _entropy(qcp)                                       # [NQ, 1]
    combined = 0.5 * (log_prob * pl.reciprocal(1.0 + ent_p, approx=True)
                      + qcp * pl.reciprocal(1.0 + ent_q, approx=True))   # [NQ, N]

    nq, nc = combined.shape
    col_idx = lax.broadcasted_iota(jnp.int32, (nq, nc), 1)
    row_max = jnp.max(combined, axis=1, keepdims=True)
    # argmax with first-occurrence tie-break (matches torch.argmax)
    pred_idx = jnp.min(jnp.where(combined == row_max, col_idx, nc),
                       axis=1, keepdims=True)
    pred = (col_idx == pred_idx).astype(jnp.float32)            # one-hot [NQ, N]

    pred_proto = jnp.dot(pred, proto,
                         preferred_element_type=jnp.float32)    # [NQ, D]
    false_proto = jnp.dot(combined * (1.0 - pred), proto,
                          preferred_element_type=jnp.float32)   # [NQ, D]
    pf_soft = jnp.tanh(_euclid(pred_proto, false_proto))        # bounded (dist >= 0)
    pro_loss = 1.0 - _mean2(pf_soft)                            # (1,1)

    overall = 0.1 * sample_loss + islb_loss + pro_loss + query_loss   # (1,1)

    # single packed writeback: slab 0 = pred, slab 1 = softmax(-dists), slab 2 = loss
    out_ref[0] = pred
    out_ref[1] = prob
    out_ref[2] = jnp.broadcast_to(overall, (nq, nc))


# ---------------------------------------------------------------------------
# batched pallas entry: B episodes per kernel launch
# ---------------------------------------------------------------------------
def run_episodes(proto, query, oproto, samp, islb, label, glabel, *, support):
    """proto/oproto: [B,N,D]  query: [B,NQ,D]  samp: [B,NS,D]
       islb/label:   [B,T,N]  glabel: [NS,N] (shared across episodes)
       Returns (loss [B], pred [B,NQ,N], score [B,NQ,N])."""
    B, N, D = proto.shape
    NQ = query.shape[1]
    NS = samp.shape[1]
    T = islb.shape[1]

    kernel = functools.partial(loss_kernel, support=support)

    packed = pl.pallas_call(
        kernel,
        grid=(B,),
        out_shape=jax.ShapeDtypeStruct((B, 3, NQ, N), jnp.float32),
        in_specs=[
            pl.BlockSpec((None, N, D), lambda b: (b, 0, 0)),     # class prototypes
            pl.BlockSpec((None, NQ, D), lambda b: (b, 0, 0)),    # query reps
            pl.BlockSpec((None, N, D), lambda b: (b, 0, 0)),     # original prototypes
            pl.BlockSpec((None, NS, D), lambda b: (b, 0, 0)),    # sampled data (flat)
            pl.BlockSpec((None, T, N), lambda b: (b, 0, 0)),     # ISLB logits
            pl.BlockSpec((None, T, N), lambda b: (b, 0, 0)),     # one-hot labels
            pl.BlockSpec((NS, N), lambda b: (0, 0)),             # generated labels (shared)
        ],
        out_specs=pl.BlockSpec((None, 3, NQ, N), lambda b: (b, 0, 0, 0)),
        compiler_params=pltpu.CompilerParams(
            dimension_semantics=("parallel",)),   # v7x: 2 TCs split the episode axis
    )(proto, query, oproto, samp, islb, label, glabel)

    pred = packed[:, 0]
    score = packed[:, 1]
    loss = packed[:, 2, 0, 0]
    return loss, pred, score


# ---------------------------------------------------------------------------
# CPU-side evaluation metrics (sklearn-style, as in the reference)
# ---------------------------------------------------------------------------
def _episode_metrics(y_true, y_pred, y_score):
    tp = np.sum((y_true == 1) & (y_pred == 1), axis=0).astype(np.float64)
    fp = np.sum((y_true == 0) & (y_pred == 1), axis=0).astype(np.float64)
    fn = np.sum((y_true == 1) & (y_pred == 0), axis=0).astype(np.float64)
    precision_c = np.where(tp + fp > 0, tp / np.maximum(tp + fp, 1e-12), 1.0)  # zero_division=1
    recall_c = np.where(tp + fn > 0, tp / np.maximum(tp + fn, 1e-12), 0.0)     # zero_division=0
    f1_c = np.where(precision_c + recall_c > 0,
                    2 * precision_c * recall_c / np.maximum(precision_c + recall_c, 1e-12),
                    0.0)
    precision = float(precision_c.mean())
    recall = float(recall_c.mean())
    f1 = float(f1_c.mean())
    accuracy = float(np.mean(np.all(y_true == y_pred, axis=1)))   # subset accuracy

    # macro one-vs-rest ROC-AUC (Mann-Whitney pairwise form)
    # TODO(synk): sklearn's roc_auc_score tie/degenerate-class handling is not fully replicated.
    aucs = []
    for c in range(y_true.shape[1]):
        pos = y_score[y_true[:, c] == 1, c]
        neg = y_score[y_true[:, c] == 0, c]
        if pos.size == 0 or neg.size == 0:
            continue
        cmp = (pos[:, None] > neg[None, :]).astype(np.float64) \
            + 0.5 * (pos[:, None] == neg[None, :])
        aucs.append(cmp.mean())
    auc = float(np.mean(aucs)) if aucs else float("nan")
    return precision, recall, f1, accuracy, auc


# ---------------------------------------------------------------------------
# module-equivalent forwards
# ---------------------------------------------------------------------------
def loss_forward(model_outputs, label_list, args):
    """Single-episode forward (same semantics as the reference nn.Module)."""
    (class_prototypes, query_representations, topk_accuracy,
     original_prototypes, sampled_data, ISLB) = model_outputs

    N = args.numNWay
    support = N * args.numKShot

    label = jnp.asarray(label_list, dtype=jnp.float32)              # [T, N]
    samp_flat = sampled_data.reshape(-1, sampled_data.shape[-1])    # [NS, D]
    S = sampled_data.shape[1]
    gen_labels = jax.nn.one_hot(jnp.repeat(jnp.arange(N), S), N,
                                dtype=jnp.float32)                  # [NS, N]

    loss, pred, score = run_episodes(
        class_prototypes[None], query_representations[None],
        original_prototypes[None], samp_flat[None], ISLB[None], label[None],
        gen_labels, support=support)

    overall_loss = loss[0]
    y_true = np.asarray(label[support:, :])
    precision, recall, f1, accuracy, auc = _episode_metrics(
        y_true, np.asarray(pred[0]), np.asarray(score[0]))
    return (overall_loss, precision, recall, f1, accuracy, auc, topk_accuracy)


def loss_forward_batched(batched_model_outputs, batched_label_list, args):
    """B episodes in ONE pallas_call (amortizes launch / DMA overhead)."""
    (class_prototypes, query_representations, topk_accuracy,
     original_prototypes, sampled_data, ISLB) = batched_model_outputs
    N = args.numNWay
    support = N * args.numKShot
    B = class_prototypes.shape[0]

    labels = jnp.asarray(batched_label_list, dtype=jnp.float32)       # [B, T, N]
    samp_flat = sampled_data.reshape(B, -1, sampled_data.shape[-1])   # [B, NS, D]
    S = sampled_data.shape[2]
    gen_labels = jax.nn.one_hot(jnp.repeat(jnp.arange(N), S), N, dtype=jnp.float32)

    loss, pred, score = run_episodes(
        class_prototypes, query_representations, original_prototypes,
        samp_flat, ISLB, labels, gen_labels, support=support)

    y_true_all = np.asarray(labels[:, support:, :])
    pred_np, score_np, loss_np = np.asarray(pred), np.asarray(score), np.asarray(loss)
    results = []
    for b in range(B):
        precision, recall, f1, accuracy, auc = _episode_metrics(
            y_true_all[b], pred_np[b], score_np[b])
        results.append((loss_np[b], precision, recall, f1, accuracy, auc, topk_accuracy))
    return results


# ---------------------------------------------------------------------------
if __name__ == "__main__":
    class Args:
        numNWay = 4
        numKShot = 2
        numQShot = 2

    args = Args()
    N, K, Q, D, S = args.numNWay, args.numKShot, args.numQShot, 32, 3
    T = N * K + N * Q          # total examples (support + query)
    B = 4                      # episodes batched into one pallas_call

    key = jax.random.PRNGKey(0)
    k1, k2, k3, k4, k5 = jax.random.split(key, 5)
    class_prototypes = jax.random.normal(k1, (B, N, D), jnp.float32)
    query_representations = jax.random.normal(k2, (B, N * Q, D), jnp.float32)
    original_prototypes = jax.random.normal(k3, (B, N, D), jnp.float32)
    sampled_data = jax.random.normal(k4, (B, N, S, D), jnp.float32)
    ISLB = jax.random.normal(k5, (B, T, N), jnp.float32)
    topk_accuracy = 0.5

    label_idx = jnp.concatenate([jnp.repeat(jnp.arange(N), K),
                                 jnp.repeat(jnp.arange(N), Q)])
    label_one = jax.nn.one_hot(label_idx, N, dtype=jnp.float32)        # [T, N]
    labels_b = jnp.broadcast_to(label_one, (B, T, N))

    # --- batched path: B episodes, one kernel launch ------------------------
    batched_outputs = (class_prototypes, query_representations, topk_accuracy,
                       original_prototypes, sampled_data, ISLB)
    batched_results = loss_forward_batched(batched_outputs, labels_b, args)
    assert len(batched_results) == B
    assert all(np.isfinite(float(r[0])) for r in batched_results)

    # --- single-episode path (reference module's forward signature) ---------
    single_outputs = (class_prototypes[0], query_representations[0], topk_accuracy,
                      original_prototypes[0], sampled_data[0], ISLB[0])
    out = loss_forward(single_outputs, label_one, args)
    overall_loss = jax.block_until_ready(out[0])
    assert np.isfinite(float(overall_loss))
    # episode 0 of the batched launch must agree with the single-episode path
    assert abs(float(overall_loss) - float(batched_results[0][0])) < 1e-4

    print("KERNEL_OK")
</pallas_src>

<mosaic_0001>
module attributes {stable_mosaic.version = 11 : i64} {
  func.func @loss_kernel(%arg0: i32, %arg1: memref<1x4x32xf32, #tpu.memory_space<vmem>>, %arg2: memref<1x8x32xf32, #tpu.memory_space<vmem>>, %arg3: memref<1x4x32xf32, #tpu.memory_space<vmem>>, %arg4: memref<1x12x32xf32, #tpu.memory_space<vmem>>, %arg5: memref<1x16x4xf32, #tpu.memory_space<vmem>>, %arg6: memref<1x16x4xf32, #tpu.memory_space<vmem>>, %arg7: memref<12x4xf32, #tpu.memory_space<vmem>>, %arg8: memref<1x3x8x4xf32, #tpu.memory_space<vmem>>) attributes {dimension_semantics = [#tpu.dimension_semantics<parallel>], iteration_bounds = array<i64: 4>, scalar_prefetch = 0 : i64, scratch_operands = 0 : i64, tpu.core_type = #tpu.core_type<tc>, window_params = [{transform_indices = @transform_0, window_bounds = array<i64: 1, 4, 32>}, {transform_indices = @transform_1, window_bounds = array<i64: 1, 8, 32>}, {transform_indices = @transform_2, window_bounds = array<i64: 1, 4, 32>}, {transform_indices = @transform_3, window_bounds = array<i64: 1, 12, 32>}, {transform_indices = @transform_4, window_bounds = array<i64: 1, 16, 4>}, {transform_indices = @transform_5, window_bounds = array<i64: 1, 16, 4>}, {pipeline_mode = #tpu.pipeline_mode<synchronous>, transform_indices = @transform_6, window_bounds = array<i64: 12, 4>}, {transform_indices = @transform_7, window_bounds = array<i64: 1, 3, 8, 4>}]} {
    %c0 = arith.constant 0 : index
    %c0_0 = arith.constant 0 : index
    %c0_1 = arith.constant 0 : index
    %0 = vector.load %arg1[%c0, %c0_0, %c0_1] : memref<1x4x32xf32, #tpu.memory_space<vmem>>, vector<1x4x32xf32>
    %1 = vector.shape_cast %0 : vector<1x4x32xf32> to vector<4x32xf32>
    %c0_2 = arith.constant 0 : index
    %c0_3 = arith.constant 0 : index
    %c0_4 = arith.constant 0 : index
    %2 = vector.load %arg2[%c0_2, %c0_3, %c0_4] : memref<1x8x32xf32, #tpu.memory_space<vmem>>, vector<1x8x32xf32>
    %3 = vector.shape_cast %2 : vector<1x8x32xf32> to vector<8x32xf32>
    %c0_5 = arith.constant 0 : index
    %c0_6 = arith.constant 0 : index
    %c0_7 = arith.constant 0 : index
    %4 = vector.load %arg3[%c0_5, %c0_6, %c0_7] : memref<1x4x32xf32, #tpu.memory_space<vmem>>, vector<1x4x32xf32>
    %5 = vector.shape_cast %4 : vector<1x4x32xf32> to vector<4x32xf32>
    %c0_8 = arith.constant 0 : index
    %c0_9 = arith.constant 0 : index
    %c0_10 = arith.constant 0 : index
    %6 = vector.load %arg4[%c0_8, %c0_9, %c0_10] : memref<1x12x32xf32, #tpu.memory_space<vmem>>, vector<1x12x32xf32>
    %7 = vector.shape_cast %6 : vector<1x12x32xf32> to vector<12x32xf32>
    %c0_11 = arith.constant 0 : index
    %c0_12 = arith.constant 0 : index
    %c0_13 = arith.constant 0 : index
    %8 = vector.load %arg5[%c0_11, %c0_12, %c0_13] : memref<1x16x4xf32, #tpu.memory_space<vmem>>, vector<1x16x4xf32>
    %9 = vector.shape_cast %8 : vector<1x16x4xf32> to vector<16x4xf32>
    %c0_14 = arith.constant 0 : index
    %c0_15 = arith.constant 0 : index
    %c0_16 = arith.constant 0 : index
    %10 = vector.load %arg6[%c0_14, %c0_15, %c0_16] : memref<1x16x4xf32, #tpu.memory_space<vmem>>, vector<1x16x4xf32>
    %11 = vector.shape_cast %10 : vector<1x16x4xf32> to vector<16x4xf32>
    %c0_17 = arith.constant 0 : index
    %c0_18 = arith.constant 0 : index
    %12 = vector.load %arg7[%c0_17, %c0_18] : memref<12x4xf32, #tpu.memory_space<vmem>>, vector<12x4xf32>
    %cst = arith.constant dense<0xFF800000> : vector<16xf32>
    %13 = vector.multi_reduction <maximumf>, %9, %cst [1] : vector<16x4xf32> to vector<16xf32>
    %14 = vector.shape_cast %13 : vector<16xf32> to vector<16x1xf32>
    %15 = vector.broadcast %14 : vector<16x1xf32> to vector<16x4xf32>
    %16 = arith.subf %9, %15 : vector<16x4xf32>
    %17 = math.exp %16 : vector<16x4xf32>
    %cst_19 = arith.constant dense<0.000000e+00> : vector<16xf32>
    %18 = vector.multi_reduction <add>, %17, %cst_19 [1] : vector<16x4xf32> to vector<16xf32>
    %19 = vector.shape_cast %18 : vector<16xf32> to vector<16x1xf32>
    %20 = math.log %19 : vector<16x1xf32>
    %21 = vector.broadcast %20 : vector<16x1xf32> to vector<16x4xf32>
    %22 = arith.subf %16, %21 : vector<16x4xf32>
    %cst_20 = arith.constant 0.000000e+00 : f32
    %23 = vector.broadcast %cst_20 : f32 to vector<16x4xf32>
    %24 = arith.subf %23, %22 : vector<16x4xf32>
    %25 = arith.mulf %24, %11 : vector<16x4xf32>
    %cst_21 = arith.constant dense<0.000000e+00> : vector<16xf32>
    %26 = vector.multi_reduction <add>, %25, %cst_21 [1] : vector<16x4xf32> to vector<16xf32>
    %27 = vector.shape_cast %26 : vector<16xf32> to vector<16x1xf32>
    %cst_22 = arith.constant dense<0.000000e+00> : vector<1xf32>
    %28 = vector.multi_reduction <add>, %27, %cst_22 [0] : vector<16x1xf32> to vector<1xf32>
    %29 = vector.shape_cast %28 : vector<1xf32> to vector<1x1xf32>
    %cst_23 = arith.constant 6.400000e+01 : f32
    %30 = vector.broadcast %cst_23 : f32 to vector<1x1xf32>
    %31 = arith.divf %29, %30 : vector<1x1xf32>
    %32 = vector.extract_strided_slice %17 {offsets = [8, 0], sizes = [8, 4], strides = [1, 1]} : vector<16x4xf32> to vector<8x4xf32>
    %33 = vector.extract_strided_slice %19 {offsets = [8, 0], sizes = [8, 1], strides = [1, 1]} : vector<16x1xf32> to vector<8x1xf32>
    %34 = tpu.reciprocal %33 {approx = true} : vector<8x1xf32> -> vector<8x1xf32>
    %35 = vector.broadcast %34 : vector<8x1xf32> to vector<8x4xf32>
    %36 = arith.mulf %32, %35 : vector<8x4xf32>
    %cst_24 = arith.constant 1.000000e+00 : f32
    %37 = vector.broadcast %cst_24 : f32 to vector<32x1xf32>
    %cst_25 = arith.constant 1.000000e+00 : f32
    %38 = vector.broadcast %cst_25 : f32 to vector<1x32xf32>
    %39 = arith.mulf %3, %3 : vector<8x32xf32>
    %cst_26 = arith.constant dense<0.000000e+00> : vector<8x1xf32>
    %40 = tpu.matmul %39, %37, %cst_26 {dimension_numbers = #tpu.dot_dimension_numbers<[1], [0], [0], [1], [0, 0, 1, 1], [], []>} : vector<8x32xf32>, vector<32x1xf32>, vector<8x1xf32> -> vector<8x1xf32>
    %41 = arith.mulf %1, %1 : vector<4x32xf32>
    %cst_27 = arith.constant dense<0.000000e+00> : vector<1x4xf32>
    %42 = tpu.matmul %38, %41, %cst_27 {dimension_numbers = #tpu.dot_dimension_numbers<[1], [1], [0], [0], [0, 0, 1, 0], [], []>} : vector<1x32xf32>, vector<4x32xf32>, vector<1x4xf32> -> vector<1x4xf32>
    %cst_28 = arith.constant dense<0.000000e+00> : vector<8x4xf32>
    %43 = tpu.matmul %3, %1, %cst_28 {dimension_numbers = #tpu.dot_dimension_numbers<[1], [1], [0], [0], [0, 0, 1, 0], [], []>} : vector<8x32xf32>, vector<4x32xf32>, vector<8x4xf32> -> vector<8x4xf32>
    %44 = vector.broadcast %40 : vector<8x1xf32> to vector<8x4xf32>
    %45 = vector.broadcast %42 : vector<1x4xf32> to vector<8x4xf32>
    %46 = arith.addf %44, %45 : vector<8x4xf32>
    %cst_29 = arith.constant 2.000000e+00 : f32
    %47 = vector.broadcast %cst_29 : f32 to vector<8x4xf32>
    %48 = arith.mulf %47, %43 : vector<8x4xf32>
    %49 = arith.subf %46, %48 : vector<8x4xf32>
    %cst_30 = arith.constant 0.000000e+00 : f32
    %50 = vector.broadcast %cst_30 : f32 to vector<8x4xf32>
    %51 = arith.maximumf %49, %50 : vector<8x4xf32>
    %cst_31 = arith.constant 0.000000e+00 : f32
    %52 = vector.broadcast %cst_31 : f32 to vector<8x4xf32>
    %53 = arith.subf %52, %51 : vector<8x4xf32>
    %cst_32 = arith.constant dense<0xFF800000> : vector<8xf32>
    %54 = vector.multi_reduction <maximumf>, %53, %cst_32 [1] : vector<8x4xf32> to vector<8xf32>
    %55 = vector.shape_cast %54 : vector<8xf32> to vector<8x1xf32>
    %56 = vector.broadcast %55 : vector<8x1xf32> to vector<8x4xf32>
    %57 = arith.subf %53, %56 : vector<8x4xf32>
    %58 = math.exp %57 : vector<8x4xf32>
    %cst_33 = arith.constant dense<0.000000e+00> : vector<8xf32>
    %59 = vector.multi_reduction <add>, %58, %cst_33 [1] : vector<8x4xf32> to vector<8xf32>
    %60 = vector.shape_cast %59 : vector<8xf32> to vector<8x1xf32>
    %61 = math.log %60 : vector<8x1xf32>
    %62 = vector.broadcast %61 : vector<8x1xf32> to vector<8x4xf32>
    %63 = arith.subf %57, %62 : vector<8x4xf32>
    %64 = tpu.reciprocal %60 {approx = true} : vector<8x1xf32> -> vector<8x1xf32>
    %65 = vector.broadcast %64 : vector<8x1xf32> to vector<8x4xf32>
    %66 = arith.mulf %58, %65 : vector<8x4xf32>
    %67 = vector.extract_strided_slice %11 {offsets = [8, 0], sizes = [8, 4], strides = [1, 1]} : vector<16x4xf32> to vector<8x4xf32>
    %cst_34 = arith.constant 0.000000e+00 : f32
    %68 = vector.broadcast %cst_34 : f32 to vector<8x4xf32>
    %69 = arith.subf %68, %67 : vector<8x4xf32>
    %70 = arith.mulf %69, %63 : vector<8x4xf32>
    %cst_35 = arith.constant dense<0.000000e+00> : vector<8xf32>
    %71 = vector.multi_reduction <add>, %70, %cst_35 [1] : vector<8x4xf32> to vector<8xf32>
    %72 = vector.shape_cast %71 : vector<8xf32> to vector<8x1xf32>
    %cst_36 = arith.constant dense<0.000000e+00> : vector<1xf32>
    %73 = vector.multi_reduction <add>, %72, %cst_36 [0] : vector<8x1xf32> to vector<1xf32>
    %74 = vector.shape_cast %73 : vector<1xf32> to vector<1x1xf32>
    %cst_37 = arith.constant 3.200000e+01 : f32
    %75 = vector.broadcast %cst_37 : f32 to vector<1x1xf32>
    %76 = arith.divf %74, %75 : vector<1x1xf32>
    %cst_38 = arith.constant 1.000000e+00 : f32
    %77 = vector.broadcast %cst_38 : f32 to vector<32x1xf32>
    %cst_39 = arith.constant 1.000000e+00 : f32
    %78 = vector.broadcast %cst_39 : f32 to vector<1x32xf32>
    %79 = arith.mulf %7, %7 : vector<12x32xf32>
    %cst_40 = arith.constant dense<0.000000e+00> : vector<12x1xf32>
    %80 = tpu.matmul %79, %77, %cst_40 {dimension_numbers = #tpu.dot_dimension_numbers<[1], [0], [0], [1], [0, 0, 1, 1], [], []>} : vector<12x32xf32>, vector<32x1xf32>, vector<12x1xf32> -> vector<12x1xf32>
    %81 = arith.mulf %5, %5 : vector<4x32xf32>
    %cst_41 = arith.constant dense<0.000000e+00> : vector<1x4xf32>
    %82 = tpu.matmul %78, %81, %cst_41 {dimension_numbers = #tpu.dot_dimension_numbers<[1], [1], [0], [0], [0, 0, 1, 0], [], []>} : vector<1x32xf32>, vector<4x32xf32>, vector<1x4xf32> -> vector<1x4xf32>
    %cst_42 = arith.constant dense<0.000000e+00> : vector<12x4xf32>
    %83 = tpu.matmul %7, %5, %cst_42 {dimension_numbers = #tpu.dot_dimension_numbers<[1], [1], [0], [0], [0, 0, 1, 0], [], []>} : vector<12x32xf32>, vector<4x32xf32>, vector<12x4xf32> -> vector<12x4xf32>
    %84 = vector.broadcast %80 : vector<12x1xf32> to vector<12x4xf32>
    %85 = vector.broadcast %82 : vector<1x4xf32> to vector<12x4xf32>
    %86 = arith.addf %84, %85 : vector<12x4xf32>
    %cst_43 = arith.constant 2.000000e+00 : f32
    %87 = vector.broadcast %cst_43 : f32 to vector<12x4xf32>
    %88 = arith.mulf %87, %83 : vector<12x4xf32>
    %89 = arith.subf %86, %88 : vector<12x4xf32>
    %cst_44 = arith.constant 0.000000e+00 : f32
    %90 = vector.broadcast %cst_44 : f32 to vector<12x4xf32>
    %91 = arith.maximumf %89, %90 : vector<12x4xf32>
    %cst_45 = arith.constant 0.000000e+00 : f32
    %92 = vector.broadcast %cst_45 : f32 to vector<12x4xf32>
    %93 = arith.subf %92, %91 : vector<12x4xf32>
    %cst_46 = arith.constant dense<0xFF800000> : vector<12xf32>
    %94 = vector.multi_reduction <maximumf>, %93, %cst_46 [1] : vector<12x4xf32> to vector<12xf32>
    %95 = vector.shape_cast %94 : vector<12xf32> to vector<12x1xf32>
    %96 = vector.broadcast %95 : vector<12x1xf32> to vector<12x4xf32>
    %97 = arith.subf %93, %96 : vector<12x4xf32>
    %98 = math.exp %97 : vector<12x4xf32>
    %cst_47 = arith.constant dense<0.000000e+00> : vector<12xf32>
    %99 = vector.multi_reduction <add>, %98, %cst_47 [1] : vector<12x4xf32> to vector<12xf32>
    %100 = vector.shape_cast %99 : vector<12xf32> to vector<12x1xf32>
    %101 = math.log %100 : vector<12x1xf32>
    %102 = vector.broadcast %101 : vector<12x1xf32> to vector<12x4xf32>
    %103 = arith.subf %97, %102 : vector<12x4xf32>
    %cst_48 = arith.constant 0.000000e+00 : f32
    %104 = vector.broadcast %cst_48 : f32 to vector<12x4xf32>
    %105 = arith.subf %104, %12 : vector<12x4xf32>
    %106 = arith.mulf %105, %103 : vector<12x4xf32>
    %cst_49 = arith.constant dense<0.000000e+00> : vector<12xf32>
    %107 = vector.multi_reduction <add>, %106, %cst_49 [1] : vector<12x4xf32> to vector<12xf32>
    %108 = vector.shape_cast %107 : vector<12xf32> to vector<12x1xf32>
    %cst_50 = arith.constant dense<0.000000e+00> : vector<1xf32>
    %109 = vector.multi_reduction <add>, %108, %cst_50 [0] : vector<12x1xf32> to vector<1xf32>
    %110 = vector.shape_cast %109 : vector<1xf32> to vector<1x1xf32>
    %cst_51 = arith.constant 4.800000e+01 : f32
    %111 = vector.broadcast %cst_51 : f32 to vector<1x1xf32>
    %112 = arith.divf %110, %111 : vector<1x1xf32>
    %cst_52 = arith.constant 1.000000e-03 : f32
    %113 = vector.broadcast %cst_52 : f32 to vector<8x4xf32>
    %114 = arith.addf %66, %113 : vector<8x4xf32>
    %115 = math.log %114 : vector<8x4xf32>
    %116 = arith.mulf %66, %115 : vector<8x4xf32>
    %cst_53 = arith.constant dense<0.000000e+00> : vector<8xf32>
    %117 = vector.multi_reduction <add>, %116, %cst_53 [1] : vector<8x4xf32> to vector<8xf32>
    %118 = vector.shape_cast %117 : vector<8xf32> to vector<8x1xf32>
    %cst_54 = arith.constant 0.000000e+00 : f32
    %119 = vector.broadcast %cst_54 : f32 to vector<8x1xf32>
    %120 = arith.subf %119, %118 : vector<8x1xf32>
    %cst_55 = arith.constant 0.000000e+00 : f32
    %121 = vector.broadcast %cst_55 : f32 to vector<8x1xf32>
    %122 = arith.maximumf %120, %121 : vector<8x1xf32>
    %cst_56 = arith.constant 1.000000e-03 : f32
    %123 = vector.broadcast %cst_56 : f32 to vector<8x4xf32>
    %124 = arith.addf %36, %123 : vector<8x4xf32>
    %125 = math.log %124 : vector<8x4xf32>
    %126 = arith.mulf %36, %125 : vector<8x4xf32>
    %cst_57 = arith.constant dense<0.000000e+00> : vector<8xf32>
    %127 = vector.multi_reduction <add>, %126, %cst_57 [1] : vector<8x4xf32> to vector<8xf32>
    %128 = vector.shape_cast %127 : vector<8xf32> to vector<8x1xf32>
    %cst_58 = arith.constant 0.000000e+00 : f32
    %129 = vector.broadcast %cst_58 : f32 to vector<8x1xf32>
    %130 = arith.subf %129, %128 : vector<8x1xf32>
    %cst_59 = arith.constant 0.000000e+00 : f32
    %131 = vector.broadcast %cst_59 : f32 to vector<8x1xf32>
    %132 = arith.maximumf %130, %131 : vector<8x1xf32>
    %cst_60 = arith.constant 1.000000e+00 : f32
    %133 = vector.broadcast %cst_60 : f32 to vector<8x1xf32>
    %134 = arith.addf %133, %122 : vector<8x1xf32>
    %135 = tpu.reciprocal %134 {approx = true} : vector<8x1xf32> -> vector<8x1xf32>
    %136 = vector.broadcast %135 : vector<8x1xf32> to vector<8x4xf32>
    %137 = arith.mulf %63, %136 : vector<8x4xf32>
    %cst_61 = arith.constant 1.000000e+00 : f32
    %138 = vector.broadcast %cst_61 : f32 to vector<8x1xf32>
    %139 = arith.addf %138, %132 : vector<8x1xf32>
    %140 = tpu.reciprocal %139 {approx = true} : vector<8x1xf32> -> vector<8x1xf32>
    %141 = vector.broadcast %140 : vector<8x1xf32> to vector<8x4xf32>
    %142 = arith.mulf %36, %141 : vector<8x4xf32>
    %143 = arith.addf %137, %142 : vector<8x4xf32>
    %cst_62 = arith.constant 5.000000e-01 : f32
    %144 = vector.broadcast %cst_62 : f32 to vector<8x4xf32>
    %145 = arith.mulf %144, %143 : vector<8x4xf32>
    %146 = tpu.iota {dimensions = array<i32: 1>} : vector<8x4xi32>
    %cst_63 = arith.constant dense<0xFF800000> : vector<8xf32>
    %147 = vector.multi_reduction <maximumf>, %145, %cst_63 [1] : vector<8x4xf32> to vector<8xf32>
    %148 = vector.shape_cast %147 : vector<8xf32> to vector<8x1xf32>
    %149 = vector.broadcast %148 : vector<8x1xf32> to vector<8x4xf32>
    %150 = arith.cmpf oeq, %145, %149 : vector<8x4xf32>
    %c4_i32 = arith.constant 4 : i32
    %151 = vector.broadcast %c4_i32 : i32 to vector<8x4xi32>
    %152 = arith.select %150, %146, %151 : vector<8x4xi1>, vector<8x4xi32>
    %cst_64 = arith.constant dense<2147483647> : vector<8xi32>
    %153 = vector.multi_reduction <minsi>, %152, %cst_64 [1] : vector<8x4xi32> to vector<8xi32>
    %154 = vector.shape_cast %153 : vector<8xi32> to vector<8x1xi32>
    %155 = vector.broadcast %154 : vector<8x1xi32> to vector<8x4xi32>
    %156 = arith.cmpi eq, %146, %155 : vector<8x4xi32>
    %157 = arith.extui %156 : vector<8x4xi1> to vector<8x4xi32>
    %158 = arith.sitofp %157 : vector<8x4xi32> to vector<8x4xf32>
    %cst_65 = arith.constant dense<0.000000e+00> : vector<8x32xf32>
    %159 = tpu.matmul %158, %1, %cst_65 {dimension_numbers = #tpu.dot_dimension_numbers<[1], [0], [0], [1], [0, 0, 1, 1], [], []>} : vector<8x4xf32>, vector<4x32xf32>, vector<8x32xf32> -> vector<8x32xf32>
    %cst_66 = arith.constant 1.000000e+00 : f32
    %160 = vector.broadcast %cst_66 : f32 to vector<8x4xf32>
    %161 = arith.subf %160, %158 : vector<8x4xf32>
    %162 = arith.mulf %145, %161 : vector<8x4xf32>
    %cst_67 = arith.constant dense<0.000000e+00> : vector<8x32xf32>
    %163 = tpu.matmul %162, %1, %cst_67 {dimension_numbers = #tpu.dot_dimension_numbers<[1], [0], [0], [1], [0, 0, 1, 1], [], []>} : vector<8x4xf32>, vector<4x32xf32>, vector<8x32xf32> -> vector<8x32xf32>
    %cst_68 = arith.constant 1.000000e+00 : f32
    %164 = vector.broadcast %cst_68 : f32 to vector<32x1xf32>
    %cst_69 = arith.constant 1.000000e+00 : f32
    %165 = vector.broadcast %cst_69 : f32 to vector<1x32xf32>
    %166 = arith.mulf %159, %159 : vector<8x32xf32>
    %cst_70 = arith.constant dense<0.000000e+00> : vector<8x1xf32>
    %167 = tpu.matmul %166, %164, %cst_70 {dimension_numbers = #tpu.dot_dimension_numbers<[1], [0], [0], [1], [0, 0, 1, 1], [], []>} : vector<8x32xf32>, vector<32x1xf32>, vector<8x1xf32> -> vector<8x1xf32>
    %168 = arith.mulf %163, %163 : vector<8x32xf32>
    %cst_71 = arith.constant dense<0.000000e+00> : vector<1x8xf32>
    %169 = tpu.matmul %165, %168, %cst_71 {dimension_numbers = #tpu.dot_dimension_numbers<[1], [1], [0], [0], [0, 0, 1, 0], [], []>} : vector<1x32xf32>, vector<8x32xf32>, vector<1x8xf32> -> vector<1x8xf32>
    %cst_72 = arith.constant dense<0.000000e+00> : vector<8x8xf32>
    %170 = tpu.matmul %159, %163, %cst_72 {dimension_numbers = #tpu.dot_dimension_numbers<[1], [1], [0], [0], [0, 0, 1, 0], [], []>} : vector<8x32xf32>, vector<8x32xf32>, vector<8x8xf32> -> vector<8x8xf32>
    %171 = vector.broadcast %167 : vector<8x1xf32> to vector<8x8xf32>
    %172 = vector.broadcast %169 : vector<1x8xf32> to vector<8x8xf32>
    %173 = arith.addf %171, %172 : vector<8x8xf32>
    %cst_73 = arith.constant 2.000000e+00 : f32
    %174 = vector.broadcast %cst_73 : f32 to vector<8x8xf32>
    %175 = arith.mulf %174, %170 : vector<8x8xf32>
    %176 = arith.subf %173, %175 : vector<8x8xf32>
    %cst_74 = arith.constant 0.000000e+00 : f32
    %177 = vector.broadcast %cst_74 : f32 to vector<8x8xf32>
    %178 = arith.maximumf %176, %177 : vector<8x8xf32>
    %179 = math.tanh %178 : vector<8x8xf32>
    %cst_75 = arith.constant dense<0.000000e+00> : vector<8xf32>
    %180 = vector.multi_reduction <add>, %179, %cst_75 [1] : vector<8x8xf32> to vector<8xf32>
    %181 = vector.shape_cast %180 : vector<8xf32> to vector<8x1xf32>
    %cst_76 = arith.constant dense<0.000000e+00> : vector<1xf32>
    %182 = vector.multi_reduction <add>, %181, %cst_76 [0] : vector<8x1xf32> to vector<1xf32>
    %183 = vector.shape_cast %182 : vector<1xf32> to vector<1x1xf32>
    %cst_77 = arith.constant 6.400000e+01 : f32
    %184 = vector.broadcast %cst_77 : f32 to vector<1x1xf32>
    %185 = arith.divf %183, %184 : vector<1x1xf32>
    %cst_78 = arith.constant 1.000000e+00 : f32
    %186 = vector.broadcast %cst_78 : f32 to vector<1x1xf32>
    %187 = arith.subf %186, %185 : vector<1x1xf32>
    %cst_79 = arith.constant 1.000000e-01 : f32
    %188 = vector.broadcast %cst_79 : f32 to vector<1x1xf32>
    %189 = arith.mulf %188, %112 : vector<1x1xf32>
    %190 = arith.addf %189, %31 : vector<1x1xf32>
    %191 = arith.addf %190, %187 : vector<1x1xf32>
    %192 = arith.addf %191, %76 : vector<1x1xf32>
    %c0_80 = arith.constant 0 : index
    %c0_81 = arith.constant 0 : index
    %c0_82 = arith.constant 0 : index
    %c0_83 = arith.constant 0 : index
    %193 = vector.load %arg8[%c0_80, %c0_81, %c0_82, %c0_83] : memref<1x3x8x4xf32, #tpu.memory_space<vmem>>, vector<1x1x8x4xf32>
    %194 = vector.shape_cast %193 : vector<1x1x8x4xf32> to vector<8x4xf32>
    %195 = vector.shape_cast %158 : vector<8x4xf32> to vector<1x1x8x4xf32>
    tpu.vector_store %arg8[%c0_80, %c0_81, %c0_82, %c0_83], %195 {strides = array<i32>} : memref<1x3x8x4xf32, #tpu.memory_space<vmem>>, vector<1x1x8x4xf32>,
    %c0_84 = arith.constant 0 : index
    %c1 = arith.constant 1 : index
    %c0_85 = arith.constant 0 : index
    %c0_86 = arith.constant 0 : index
    %196 = vector.load %arg8[%c0_84, %c1, %c0_85, %c0_86] : memref<1x3x8x4xf32, #tpu.memory_space<vmem>>, vector<1x1x8x4xf32>
    %197 = vector.shape_cast %196 : vector<1x1x8x4xf32> to vector<8x4xf32>
    %198 = vector.shape_cast %66 : vector<8x4xf32> to vector<1x1x8x4xf32>
    tpu.vector_store %arg8[%c0_84, %c1, %c0_85, %c0_86], %198 {strides = array<i32>} : memref<1x3x8x4xf32, #tpu.memory_space<vmem>>, vector<1x1x8x4xf32>,
    %199 = vector.shape_cast %192 : vector<1x1xf32> to vector<1x1xf32>
    %200 = vector.broadcast %199 : vector<1x1xf32> to vector<8x4xf32>
    %c0_87 = arith.constant 0 : index
    %c2 = arith.constant 2 : index
    %c0_88 = arith.constant 0 : index
    %c0_89 = arith.constant 0 : index
    %201 = vector.load %arg8[%c0_87, %c2, %c0_88, %c0_89] : memref<1x3x8x4xf32, #tpu.memory_space<vmem>>, vector<1x1x8x4xf32>
    %202 = vector.shape_cast %201 : vector<1x1x8x4xf32> to vector<8x4xf32>
    %203 = vector.shape_cast %200 : vector<8x4xf32> to vector<1x1x8x4xf32>
    tpu.vector_store %arg8[%c0_87, %c2, %c0_88, %c0_89], %203 {strides = array<i32>} : memref<1x3x8x4xf32, #tpu.memory_space<vmem>>, vector<1x1x8x4xf32>,
    return
  }
  func.func @transform_0(%arg0: i32) -> (i32, i32, i32) {
    %c0_i32 = arith.constant 0 : i32
    %c0_i32_0 = arith.constant 0 : i32
    %c0_i32_1 = arith.constant 0 : i32
    return %arg0, %c0_i32, %c0_i32_0 : i32, i32, i32
  }
  func.func @transform_1(%arg0: i32) -> (i32, i32, i32) {
    %c0_i32 = arith.constant 0 : i32
    %c0_i32_0 = arith.constant 0 : i32
    %c0_i32_1 = arith.constant 0 : i32
    return %arg0, %c0_i32, %c0_i32_0 : i32, i32, i32
  }
  func.func @transform_2(%arg0: i32) -> (i32, i32, i32) {
    %c0_i32 = arith.constant 0 : i32
    %c0_i32_0 = arith.constant 0 : i32
    %c0_i32_1 = arith.constant 0 : i32
    return %arg0, %c0_i32, %c0_i32_0 : i32, i32, i32
  }
  func.func @transform_3(%arg0: i32) -> (i32, i32, i32) {
    %c0_i32 = arith.constant 0 : i32
    %c0_i32_0 = arith.constant 0 : i32
    %c0_i32_1 = arith.constant 0 : i32
    return %arg0, %c0_i32, %c0_i32_0 : i32, i32, i32
  }
  func.func @transform_4(%arg0: i32) -> (i32, i32, i32) {
    %c0_i32 = arith.constant 0 : i32
    %c0_i32_0 = arith.constant 0 : i32
    %c0_i32_1 = arith.constant 0 : i32
    return %arg0, %c0_i32, %c0_i32_0 : i32, i32, i32
  }
  func.func @transform_5(%arg0: i32) -> (i32, i32, i32) {
    %c0_i32 = arith.constant 0 : i32
    %c0_i32_0 = arith.constant 0 : i32
    %c0_i32_1 = arith.constant 0 : i32
    return %arg0, %c0_i32, %c0_i32_0 : i32, i32, i32
  }
  func.func @transform_6(%arg0: i32) -> (i32, i32) {
    %c0_i32 = arith.constant 0 : i32
    %c0_i32_0 = arith.constant 0 : i32
    %c0_i32_1 = arith.constant 0 : i32
    return %c0_i32, %c0_i32_0 : i32, i32
  }
  func.func @transform_7(%arg0: i32) -> (i32, i32, i32, i32) {
    %c0_i32 = arith.constant 0 : i32
    %c0_i32_0 = arith.constant 0 : i32
    %c0_i32_1 = arith.constant 0 : i32
    %c0_i32_2 = arith.constant 0 : i32
    return %arg0, %c0_i32, %c0_i32_0, %c0_i32_1 : i32, i32, i32, i32
  }
}

</mosaic_0001>

<llo_original>
// kernel: tpu_custom_call.1
$region0: #{tpu_custom_call.1}
  #allocation0 [shape = 'u32[]', space=smem, size = 0x4, offset = 0x4, fixed_abs, tag = 'smem constant byte address 0x4 - core index']
  #allocation1 [shape = 'u32[72,128]{1,0:T(1,128)}', space=vmem, size = 0x9000, scoped, tag = 'internal scratch']
  %s0 = inlined_call_operand.vmem [shape: f32[4,4,32], index: 0, kind: input, shape index: {}]
  %s1 = inlined_call_operand.vmem [shape: f32[4,8,32], index: 1, kind: input, shape index: {}]
  %s2 = inlined_call_operand.vmem [shape: f32[4,4,32], index: 2, kind: input, shape index: {}]
  %s3 = inlined_call_operand.vmem [shape: f32[4,12,32], index: 3, kind: input, shape index: {}]
  %s4 = inlined_call_operand.vmem [shape: f32[4,16,4], index: 4, kind: input, shape index: {}]
  %s5 = inlined_call_operand.vmem [shape: f32[4,16,4], index: 5, kind: input, shape index: {}]
  %s6 = inlined_call_operand.vmem [shape: f32[12,4], index: 6, kind: input, shape index: {}]
  %s7 = inlined_call_operand.vmem [shape: f32[4,3,8,4], index: 7, kind: output, shape index: {}]
  %s8 = sld [smem:[#allocation0]]
  $region61: #{tpu_custom_call.1} parent=0
    _
  %s10 = ssub.s32 1, %s8
  %s11 = scalar_select 0, %s10, %s8
  loop: start=0, step=1, limit=6
  $region2: #{tpu_custom_call.1} parent=0 // loop_pre_header
    _
  $region3: #{tpu_custom_call.1} parent=0 // loop_header
    %s13 = sphi 0, %s17
    %p14 = scmp.ge.s32.totalorder %s13, 6
    %s23 = sphi 0, %s25
    %s26 = sphi 0, %s23
    %s27 = sphi 0, %s26
    %s43 = sphi 0, %s27
    %s49 = sphi 0, %s51
    %s52 = sphi 0, %s49
    %s53 = sphi 0, %s52
    %s69 = sphi 0, %s53
    %s75 = sphi 0, %s77
    %s78 = sphi 0, %s75
    %s79 = sphi 0, %s78
    %s95 = sphi 0, %s79
    %s101 = sphi 0, %s103
    %s104 = sphi 0, %s101
    %s105 = sphi 0, %s104
    %s121 = sphi 0, %s105
    %s127 = sphi 0, %s129
    %s130 = sphi 0, %s127
    %s131 = sphi 0, %s130
    %s147 = sphi 0, %s131
    %s153 = sphi 0, %s155
    %s156 = sphi 0, %s153
    %s157 = sphi 0, %s156
    %s173 = sphi 0, %s157
    %s177 = sphi 0, %s177
    %s179 = sphi 0, %s177
    %s180 = sphi 0, %s179
    %s194 = sphi 0, %s180
    %s200 = sphi 0, %s202
    %s203 = sphi 0, %s200
    %s204 = sphi 0, %s203
    %s220 = sphi 0, %s204
  $region4: #{tpu_custom_call.1} parent=0 // loop_header_branch
    %16 = sbr.rel (%p14) target = $region8
  $region5: #{tpu_custom_call.1} parent=0 // loop_body
    %s18 = ssub.s32 %s13, 1
    %s19 = ssub.s32 %s13, 2
    %s20 = sadd.s32 %s13, 1
    %s21 = ssub.s32 %s13, %s20
    %p22 = scmp.eq.s32.totalorder %s21, 0
    %s24 = sadd.s32 %s23, 1
    %s25 = scalar_select %p22, %s23, %s24
    %p28 = pneg %p22
    %p29 = scmp.eq.s32.totalorder %s13, 3
    %p30 = por %p28, %p29
    %p31 = scmp.ne.s32.totalorder %s23, %s26
    %p32 = scmp.eq.s32.totalorder %s13, 0
    %p33 = por %p31, %p32
    %p34 = scmp.ne.s32.totalorder %s23, %s26
    %p35 = scmp.eq.s32.totalorder %s18, 3
    %p36 = por %p34, %p35
    %p37 = scmp.ne.s32.totalorder %s26, %s27
    %p38 = scmp.eq.s32.totalorder %s18, 0
    %p39 = por %p37, %p38
    %p40 = scmp.ne.s32.totalorder %s26, %s27
    %p41 = scmp.eq.s32.totalorder %s19, 3
    %p42 = por %p40, %p41
    %p44 = scmp.ne.s32.totalorder %s27, %s43
    %p45 = scmp.eq.s32.totalorder %s19, 0
    %p46 = por %p44, %p45
    %s47 = ssub.s32 %s13, %s20
    %p48 = scmp.eq.s32.totalorder %s47, 0
    %s50 = sadd.s32 %s49, 1
    %s51 = scalar_select %p48, %s49, %s50
    %p54 = pneg %p48
    %p55 = scmp.eq.s32.totalorder %s13, 3
    %p56 = por %p54, %p55
    %p57 = scmp.ne.s32.totalorder %s49, %s52
    %p58 = scmp.eq.s32.totalorder %s13, 0
    %p59 = por %p57, %p58
    %p60 = scmp.ne.s32.totalorder %s49, %s52
    %p61 = scmp.eq.s32.totalorder %s18, 3
    %p62 = por %p60, %p61
    %p63 = scmp.ne.s32.totalorder %s52, %s53
    %p64 = scmp.eq.s32.totalorder %s18, 0
    %p65 = por %p63, %p64
    %p66 = scmp.ne.s32.totalorder %s52, %s53
    %p67 = scmp.eq.s32.totalorder %s19, 3
    %p68 = por %p66, %p67
    %p70 = scmp.ne.s32.totalorder %s53, %s69
    %p71 = scmp.eq.s32.totalorder %s19, 0
    %p72 = por %p70, %p71
    %s73 = ssub.s32 %s13, %s20
    %p74 = scmp.eq.s32.totalorder %s73, 0
    %s76 = sadd.s32 %s75, 1
    %s77 = scalar_select %p74, %s75, %s76
    %p80 = pneg %p74
    %p81 = scmp.eq.s32.totalorder %s13, 3
    %p82 = por %p80, %p81
    %p83 = scmp.ne.s32.totalorder %s75, %s78
    %p84 = scmp.eq.s32.totalorder %s13, 0
    %p85 = por %p83, %p84
    %p86 = scmp.ne.s32.totalorder %s75, %s78
    %p87 = scmp.eq.s32.totalorder %s18, 3
    %p88 = por %p86, %p87
    %p89 = scmp.ne.s32.totalorder %s78, %s79
    %p90 = scmp.eq.s32.totalorder %s18, 0
    %p91 = por %p89, %p90
    %p92 = scmp.ne.s32.totalorder %s78, %s79
    %p93 = scmp.eq.s32.totalorder %s19, 3
    %p94 = por %p92, %p93
    %p96 = scmp.ne.s32.totalorder %s79, %s95
    %p97 = scmp.eq.s32.totalorder %s19, 0
    %p98 = por %p96, %p97
    %s99 = ssub.s32 %s13, %s20
    %p100 = scmp.eq.s32.totalorder %s99, 0
    %s102 = sadd.s32 %s101, 1
    %s103 = scalar_select %p100, %s101, %s102
    %p106 = pneg %p100
    %p107 = scmp.eq.s32.totalorder %s13, 3
    %p108 = por %p106, %p107
    %p109 = scmp.ne.s32.totalorder %s101, %s104
    %p110 = scmp.eq.s32.totalorder %s13, 0
    %p111 = por %p109, %p110
    %p112 = scmp.ne.s32.totalorder %s101, %s104
    %p113 = scmp.eq.s32.totalorder %s18, 3
    %p114 = por %p112, %p113
    %p115 = scmp.ne.s32.totalorder %s104, %s105
    %p116 = scmp.eq.s32.totalorder %s18, 0
    %p117 = por %p115, %p116
    %p118 = scmp.ne.s32.totalorder %s104, %s105
    %p119 = scmp.eq.s32.totalorder %s19, 3
    %p120 = por %p118, %p119
    %p122 = scmp.ne.s32.totalorder %s105, %s121
    %p123 = scmp.eq.s32.totalorder %s19, 0
    %p124 = por %p122, %p123
    %s125 = ssub.s32 %s13, %s20
    %p126 = scmp.eq.s32.totalorder %s125, 0
    %s128 = sadd.s32 %s127, 1
    %s129 = scalar_select %p126, %s127, %s128
    %p132 = pneg %p126
    %p133 = scmp.eq.s32.totalorder %s13, 3
    %p134 = por %p132, %p133
    %p135 = scmp.ne.s32.totalorder %s127, %s130
    %p136 = scmp.eq.s32.totalorder %s13, 0
    %p137 = por %p135, %p136
    %p138 = scmp.ne.s32.totalorder %s127, %s130
    %p139 = scmp.eq.s32.totalorder %s18, 3
    %p140 = por %p138, %p139
    %p141 = scmp.ne.s32.totalorder %s130, %s131
    %p142 = scmp.eq.s32.totalorder %s18, 0
    %p143 = por %p141, %p142
    %p144 = scmp.ne.s32.totalorder %s130, %s131
    %p145 = scmp.eq.s32.totalorder %s19, 3
    %p146 = por %p144, %p145
    %p148 = scmp.ne.s32.totalorder %s131, %s147
    %p149 = scmp.eq.s32.totalorder %s19, 0
    %p150 = por %p148, %p149
    %s151 = ssub.s32 %s13, %s20
    %p152 = scmp.eq.s32.totalorder %s151, 0
    %s154 = sadd.s32 %s153, 1
    %s155 = scalar_select %p152, %s153, %s154
    %p158 = pneg %p152
    %p159 = scmp.eq.s32.totalorder %s13, 3
    %p160 = por %p158, %p159
    %p161 = scmp.ne.s32.totalorder %s153, %s156
    %p162 = scmp.eq.s32.totalorder %s13, 0
    %p163 = por %p161, %p162
    %p164 = scmp.ne.s32.totalorder %s153, %s156
    %p165 = scmp.eq.s32.totalorder %s18, 3
    %p166 = por %p164, %p165
    %p167 = scmp.ne.s32.totalorder %s156, %s157
    %p168 = scmp.eq.s32.totalorder %s18, 0
    %p169 = por %p167, %p168
    %p170 = scmp.ne.s32.totalorder %s156, %s157
    %p171 = scmp.eq.s32.totalorder %s19, 3
    %p172 = por %p170, %p171
    %p174 = scmp.ne.s32.totalorder %s157, %s173
    %p175 = scmp.eq.s32.totalorder %s19, 0
    %p176 = por %p174, %p175
    %s178 = sadd.s32 %s177, 1
    %p181 = scmp.eq.s32.totalorder %s13, 3
    %p182 = scmp.ne.s32.totalorder %s177, %s179
    %p183 = scmp.eq.s32.totalorder %s13, 0
    %p184 = por %p182, %p183
    %p185 = scmp.ne.s32.totalorder %s177, %s179
    %p186 = scmp.eq.s32.totalorder %s18, 3
    %p187 = por %p185, %p186
    %p188 = scmp.ne.s32.totalorder %s179, %s180
    %p189 = scmp.eq.s32.totalorder %s18, 0
    %p190 = por %p188, %p189
    %p191 = scmp.ne.s32.totalorder %s179, %s180
    %p192 = scmp.eq.s32.totalorder %s19, 3
    %p193 = por %p191, %p192
    %p195 = scmp.ne.s32.totalorder %s180, %s194
    %p196 = scmp.eq.s32.totalorder %s19, 0
    %p197 = por %p195, %p196
    %s198 = ssub.s32 %s13, %s20
    %p199 = scmp.eq.s32.totalorder %s198, 0
    %s201 = sadd.s32 %s200, 1
    %s202 = scalar_select %p199, %s200, %s201
    %p205 = pneg %p199
    %p206 = scmp.eq.s32.totalorder %s13, 3
    %p207 = por %p205, %p206
    %p208 = scmp.ne.s32.totalorder %s200, %s203
    %p209 = scmp.eq.s32.totalorder %s13, 0
    %p210 = por %p208, %p209
    %p211 = scmp.ne.s32.totalorder %s200, %s203
    %p212 = scmp.eq.s32.totalorder %s18, 3
    %p213 = por %p211, %p212
    %p214 = scmp.ne.s32.totalorder %s203, %s204
    %p215 = scmp.eq.s32.totalorder %s18, 0
    %p216 = por %p214, %p215
    %p217 = scmp.ne.s32.totalorder %s203, %s204
    %p218 = scmp.eq.s32.totalorder %s19, 3
    %p219 = por %p217, %p218
    %p221 = scmp.ne.s32.totalorder %s204, %s220
    %p222 = scmp.eq.s32.totalorder %s19, 0
    %p223 = por %p221, %p222
    %p224 = scmp.le.s32.totalorder 1, %s13
    %p225 = scmp.lt.s32.totalorder %s13, 5
    %p226 = pnand %p224, %p225
    %p227 = pneg %p226
    // Predicated region
    $region9: #{tpu_custom_call.1} parent=5 // pred_check
      _
    $region10: #{tpu_custom_call.1} parent=5 // pred_check_branch
      %229 = sbr.rel (%p226) target = $region12
    $region11: #{tpu_custom_call.1} parent=5 // pred_region
      %s230 = ssub.s32 %s13, 1
      // Predicated region
      $region13: #{tpu_custom_call.1} parent=11 // pred_check
        %p231 = pneg %p190
      $region14: #{tpu_custom_call.1} parent=11 // pred_check_branch
        %233 = sbr.rel (%p231) target = $region16
      $region15: #{tpu_custom_call.1} parent=11 // pred_region
        _
      $region16: #{tpu_custom_call.1} parent=11 // pred_fallthru
        _
    $region12: #{tpu_custom_call.1} parent=5 // pred_fallthru
      _
    %p234 = scmp.lt.s32.totalorder %s13, 4
    // Predicated region
    $region17: #{tpu_custom_call.1} parent=5 // pred_check
      %p235 = pneg %p234
    $region18: #{tpu_custom_call.1} parent=5 // pred_check_branch
      %237 = sbr.rel (%p235) target = $region20
    $region19: #{tpu_custom_call.1} parent=5 // pred_region
      // Predicated region
      $region21: #{tpu_custom_call.1} parent=19 // pred_check
        %p238 = pneg %p33
      $region22: #{tpu_custom_call.1} parent=19 // pred_check_branch
        %240 = sbr.rel (%p238) target = $region24
      $region23: #{tpu_custom_call.1} parent=19 // pred_region
        %p241 = scmp.lt.s32.totalorder %s13, 3
        %s242 = scalar_select %p241, %s13, 3
        %s243 = smul.addr %s242, 4
        %s244 = scalar_lea.vmem %s0, %s243
      $region24: #{tpu_custom_call.1} parent=19 // pred_fallthru
        _
      // Predicated region
      $region25: #{tpu_custom_call.1} parent=19 // pred_check
        %p245 = pneg %p59
      $region26: #{tpu_custom_call.1} parent=19 // pred_check_branch
        %247 = sbr.rel (%p245) target = $region28
      $region27: #{tpu_custom_call.1} parent=19 // pred_region
        %p248 = scmp.lt.s32.totalorder %s13, 3
        %s249 = scalar_select %p248, %s13, 3
        %s250 = smul.addr %s249, 8
        %s251 = scalar_lea.vmem %s1, %s250
      $region28: #{tpu_custom_call.1} parent=19 // pred_fallthru
        _
      // Predicated region
      $region29: #{tpu_custom_call.1} parent=19 // pred_check
        %p252 = pneg %p85
      $region30: #{tpu_custom_call.1} parent=19 // pred_check_branch
        %254 = sbr.rel (%p252) target = $region32
      $region31: #{tpu_custom_call.1} parent=19 // pred_region
        %p255 = scmp.lt.s32.totalorder %s13, 3
        %s256 = scalar_select %p255, %s13, 3
        %s257 = smul.addr %s256, 4
        %s258 = scalar_lea.vmem %s2, %s257
      $region32: #{tpu_custom_call.1} parent=19 // pred_fallthru
        _
      // Predicated region
      $region33: #{tpu_custom_call.1} parent=19 // pred_check
        %p259 = pneg %p111
      $region34: #{tpu_custom_call.1} parent=19 // pred_check_branch
        %261 = sbr.rel (%p259) target = $region36
      $region35: #{tpu_custom_call.1} parent=19 // pred_region
        %p262 = scmp.lt.s32.totalorder %s13, 3
        %s263 = scalar_select %p262, %s13, 3
        %s264 = smul.addr %s263, 2
        %s265 = smul.addr %s264, 8
        %s266 = scalar_lea.vmem %s3, %s265
      $region36: #{tpu_custom_call.1} parent=19 // pred_fallthru
        _
      // Predicated region
      $region37: #{tpu_custom_call.1} parent=19 // pred_check
        %p267 = pneg %p137
      $region38: #{tpu_custom_call.1} parent=19 // pred_check_branch
        %269 = sbr.rel (%p267) target = $region40
      $region39: #{tpu_custom_call.1} parent=19 // pred_region
        %p270 = scmp.lt.s32.totalorder %s13, 3
        %s271 = scalar_select %p270, %s13, 3
        %s272 = smul.addr %s271, 2
        %s273 = smul.addr %s272, 8
        %s274 = scalar_lea.vmem %s4, %s273
      $region40: #{tpu_custom_call.1} parent=19 // pred_fallthru
        _
      // Predicated region
      $region41: #{tpu_custom_call.1} parent=19 // pred_check
        %p275 = pneg %p163
      $region42: #{tpu_custom_call.1} parent=19 // pred_check_branch
        %277 = sbr.rel (%p275) target = $region44
      $region43: #{tpu_custom_call.1} parent=19 // pred_region
        %p278 = scmp.lt.s32.totalorder %s13, 3
        %s279 = scalar_select %p278, %s13, 3
        %s280 = smul.addr %s279, 2
        %s281 = smul.addr %s280, 8
        %s282 = scalar_lea.vmem %s5, %s281
      $region44: #{tpu_custom_call.1} parent=19 // pred_fallthru
        _
    $region20: #{tpu_custom_call.1} parent=5 // pred_fallthru
      _
    %p283 = scmp.le.s32.totalorder 1, %s13
    %p284 = scmp.lt.s32.totalorder %s13, 5
    %p285 = pnand %p283, %p284
    %p286 = pneg %p285
    // Predicated region
    $region45: #{tpu_custom_call.1} parent=5 // pred_check
      _
    $region46: #{tpu_custom_call.1} parent=5 // pred_check_branch
      %288 = sbr.rel (%p285) target = $region48
    $region47: #{tpu_custom_call.1} parent=5 // pred_region
      %s289 = ssub.s32 %s13, 1
      %p290 = scmp.lt.s32.totalorder %s18, 3
      %s291 = scalar_select %p290, %s18, 3
      %s292 = smul.addr %s291, 4
      %s293 = scalar_lea.vmem %s0, %s292
      %p294 = pneg %p39
      %p295 = pneg %p36
      %p296 = scmp.lt.s32.totalorder %s18, 3
      %s297 = scalar_select %p296, %s18, 3
      %s298 = smul.addr %s297, 8
      %s299 = scalar_lea.vmem %s1, %s298
      %p300 = pneg %p65
      %p301 = pneg %p62
      %p302 = scmp.lt.s32.totalorder %s18, 3
      %s303 = scalar_select %p302, %s18, 3
      %s304 = smul.addr %s303, 4
      %s305 = scalar_lea.vmem %s2, %s304
      %p306 = pneg %p91
      %p307 = pneg %p88
      %p308 = scmp.lt.s32.totalorder %s18, 3
      %s309 = scalar_select %p308, %s18, 3
      %s310 = smul.addr %s309, 2
      %s311 = smul.addr %s310, 8
      %s312 = scalar_lea.vmem %s3, %s311
      %p313 = pneg %p117
      %p314 = pneg %p114
      %p315 = scmp.lt.s32.totalorder %s18, 3
      %s316 = scalar_select %p315, %s18, 3
      %s317 = smul.addr %s316, 2
      %s318 = smul.addr %s317, 8
      %s319 = scalar_lea.vmem %s4, %s318
      %p320 = pneg %p143
      %p321 = pneg %p140
      %p322 = scmp.lt.s32.totalorder %s18, 3
      %s323 = scalar_select %p322, %s18, 3
      %s324 = smul.addr %s323, 2
      %s325 = smul.addr %s324, 8
      %s326 = scalar_lea.vmem %s5, %s325
      %p327 = pneg %p169
      %p328 = pneg %p166
      %p329 = pneg %p190
      %p330 = pneg %p187
      %p331 = pneg %p216
      %p332 = pneg %p213
      %p333 = scmp.lt.s32.totalorder %s18, 3
      %s334 = scalar_select %p333, %s18, 3
      %s335 = smul.addr %s334, 3
      %s336 = smul.addr %s335, 8
      %s337 = scalar_lea.vmem %s7, %s336
      %p338 = scmp.lt.s32.totalorder %s18, 3
      %s339 = scalar_select %p338, %s18, 3
      %s340 = smul.addr %s339, 4
      %s341 = scalar_lea.vmem %s0, %s340
      %p342 = scmp.lt.s32.totalorder %s18, 3
      %s343 = scalar_select %p342, %s18, 3
      %s344 = smul.addr %s343, 8
      %s345 = scalar_lea.vmem %s1, %s344
      %p346 = scmp.lt.s32.totalorder %s18, 3
      %s347 = scalar_select %p346, %s18, 3
      %s348 = smul.addr %s347, 4
      %s349 = scalar_lea.vmem %s2, %s348
      %p350 = scmp.lt.s32.totalorder %s18, 3
      %s351 = scalar_select %p350, %s18, 3
      %s352 = smul.addr %s351, 2
      %s353 = smul.addr %s352, 8
      %s354 = scalar_lea.vmem %s3, %s353
      %p355 = scmp.lt.s32.totalorder %s18, 3
      %s356 = scalar_select %p355, %s18, 3
      %s357 = smul.addr %s356, 2
      %s358 = smul.addr %s357, 8
      %s359 = scalar_lea.vmem %s4, %s358
      %p360 = scmp.lt.s32.totalorder %s18, 3
      %s361 = scalar_select %p360, %s18, 3
      %s362 = smul.addr %s361, 2
      %s363 = smul.addr %s362, 8
      %s364 = scalar_lea.vmem %s5, %s363
      %p365 = scmp.lt.s32.totalorder %s18, 3
      %s366 = scalar_select %p365, %s18, 3
      %s367 = smul.addr %s366, 3
      %s368 = smul.addr %s367, 8
      %s369 = scalar_lea.vmem %s7, %s368
      %v370 = vld [vmem:[%s341] sm:$0xf]
      %v371 = vld [vmem:[%s345] sm:$0xff]
      %v372 = vld [vmem:[%s349] sm:$0xf]
      %v373 = vld [vmem:[%s354] sm:$0xff]
      %v374 = vld [vmem:[%s354 + $0x8] sm:$0xf]
      %v375 = vld [vmem:[%s359] sm:$0xff]
      %v376 = vld [vmem:[%s359 + $0x8] sm:$0xff]
      %v377 = vld [vmem:[%s364] sm:$0xff]
      %v378 = vld [vmem:[%s364 + $0x8] sm:$0xff]
      %v379 = vld [vmem:[%s6] sm:$0xff]
      %v380 = vld [vmem:[%s6 + $0x8] sm:$0xf]
      %vm381 = vcmask 31744
      %v382 = vsel %vm381, %v375, -inf
      %383 = vmax.xlane.f32.xlu0 %v382
      %v384 = vpop.xlane.xlu0 %383
      %v385 = vsel %vm381, %v376, -inf
      %386 = vmax.xlane.f32.xlu0 %v385
      %v387 = vpop.xlane.xlu0 %386
      %v388 = vsub.f32 %v375, %v384
      %v389 = vsub.f32 %v376, %v387
      %v390 = vmul.f32 %v388, 1.442695
      %v391 = vpow.pop %v390
      %v392 = vmul.f32 %v389, 1.442695
      %v393 = vpow.pop %v392
      %v394 = vsel %vm381, %v391, 0.0
      %395 = vadd.xlane.f32.xlu0 %v394
      %v396 = vpop.xlane.xlu0 %395
      %v397 = vsel %vm381, %v393, 0.0
      %398 = vadd.xlane.f32.xlu0 %v397
      %v399 = vpop.xlane.xlu0 %398
      %v400 = vlog2.pop %v396
      %v401 = vmul.f32 %v400, 0.6931472
      %v402 = vlog2.pop %v399
      %v403 = vmul.f32 %v402, 0.6931472
      %v404 = vsub.f32 %v388, %v401
      %v405 = vsub.f32 %v389, %v403
      %v406 = vsub.f32 0.0, %v404
      %v407 = vsub.f32 0.0, %v405
      %v408 = vmul.f32 %v406, %v377
      %v409 = vmul.f32 %v407, %v378
      %v410 = vsel %vm381, %v408, 0.0
      %411 = vadd.xlane.f32.xlu0 %v410
      %v412 = vpop.xlane.xlu0 %411
      %v413 = vsel %vm381, %v409, 0.0
      %414 = vadd.xlane.f32.xlu0 %v413
      %v415 = vpop.xlane.xlu0 %414
      %v416 = vadd.f32 %v412, %v415
      %v417 = vrot.slane %v416, 4
      %v418 = vadd.f32 %v416, %v417
      %v419 = vrot.slane %v418, 2
      %v420 = vadd.f32 %v418, %v419
      %v421 = vrot.slane %v420, 1
      %v422 = vadd.f32 %v420, %v421
      %v423 = vrcp.pop 64.0
      %v424 = vmul.f32 64.0, %v423
      %v425 = vsub.f32 1.0, %v424
      %v426 = vmul.f32 %v423, %v425
      %v427 = vadd.f32 %v423, %v426
      %vm428 = vweird.f32 %v423
      %v429 = vsel %vm428, %v423, %v427
      %v430 = vmul.f32 %v422, %v429
      %v431 = vrcp.pop %v399
      %v432 = vmul.f32 %v393, %v431
      %v433 = vmul.f32 %v371, %v371
      %vm434 = vcmask 261120
      %v436 = vsel %vm434, %v433, 0
      %438 = vmatpush.msra.mxu0 0.0
      %439 = vmatpush.msra.mxu0 0.0
      %440 = vmatpush.msra.mxu0 0.0
      %441 = vmatpush.msra.mxu0 0.0
      %442 = vmatpush.msra.mxu0 0.0
      %443 = vmatpush.msra.mxu0 0.0
      %444 = vmatpush.msra.mxu0 0.0
      %445 = vmatpush.msra.mxu0 0.0
      %446 = vmatpush.msra.mxu0 0.0
      %447 = vmatpush.msra.mxu0 0.0
      %448 = vmatpush.msra.mxu0 0.0
      %449 = vmatpush.msra.mxu0 0.0
      %450 = vmatpush.msra.mxu0 1.0
      %451 = vmatpush.msra.mxu0 1.0
      %452 = vmatpush.msra.mxu0 1.0
      %453 = vmatpush.msra.mxu0 1.0
      %454 = vmatmul.f32.gmra.mxu0 %v436
      %v455 = vpop.f32.mrf.mxu0
      %v456 = vadd.f32 0.0, %v455
      %457 = vdwg.mxu0
      %v458 = vmul.f32 %v370, %v370
      %v460 = vsel %vm434, 1.0, 0
      %v463 = vsel %vm434, %v458, 0
      %465 = vmatpush.xpose.msra.mxu0 0.0
      %466 = vmatpush.xpose.msra.mxu0 0.0
      %467 = vmatpush.xpose.msra.mxu0 0.0
      %468 = vmatpush.xpose.msra.mxu0 0.0
      %469 = vmatpush.xpose.msra.mxu0 0.0
      %470 = vmatpush.xpose.msra.mxu0 0.0
      %471 = vmatpush.xpose.msra.mxu0 0.0
      %472 = vmatpush.xpose.msra.mxu0 0.0
      %473 = vmatpush.xpose.msra.mxu0 0.0
      %474 = vmatpush.xpose.msra.mxu0 0.0
      %475 = vmatpush.xpose.msra.mxu0 0.0
      %476 = vmatpush.xpose.msra.mxu0 0.0
      %477 = vmatpush.xpose.msra.mxu0 0.0
      %478 = vmatpush.xpose.msra.mxu0 0.0
      %479 = vmatpush.xpose.msra.mxu0 0.0
      %480 = vmatpush.xpose.msra.mxu0 %v463
      %481 = vmatmul.f32.gmra.mxu0 %v460
      %v482 = vpop.f32.mrf.mxu0
      %v483 = vadd.f32 0.0, %v482
      %484 = vdwg.mxu0
      %v486 = vsel %vm434, %v371, 0
      %v489 = vsel %vm434, %v370, 0
      %491 = vmatpush.xpose.msra.mxu0 0.0
      %492 = vmatpush.xpose.msra.mxu0 0.0
      %493 = vmatpush.xpose.msra.mxu0 0.0
      %494 = vmatpush.xpose.msra.mxu0 0.0
      %495 = vmatpush.xpose.msra.mxu0 0.0
      %496 = vmatpush.xpose.msra.mxu0 0.0
      %497 = vmatpush.xpose.msra.mxu0 0.0
      %498 = vmatpush.xpose.msra.mxu0 0.0
      %499 = vmatpush.xpose.msra.mxu0 0.0
      %500 = vmatpush.xpose.msra.mxu0 0.0
      %501 = vmatpush.xpose.msra.mxu0 0.0
      %502 = vmatpush.xpose.msra.mxu0 0.0
      %503 = vmatpush.xpose.msra.mxu0 0.0
      %504 = vmatpush.xpose.msra.mxu0 0.0
      %505 = vmatpush.xpose.msra.mxu0 0.0
      %506 = vmatpush.xpose.msra.mxu0 %v489
      %507 = vmatmul.f32.gmra.mxu0 %v486
      %v508 = vpop.f32.mrf.mxu0
      %v509 = vadd.f32 0.0, %v508
      %510 = vdwg.mxu0
      %512 = vset.pattern.permute.xlu0 0
      %513 = vperm.xlu0 %512, %v456
      %v514 = vpop.permute.xlu0 %513
      %v516 = vperm.slane %v483, 0
      %v517 = vadd.f32 %v514, %v516
      %v518 = vmul.f32 %v509, 2.0
      %v519 = vsub.f32 %v517, %v518
      %v520 = vmax.f32 %v519, 0.0
      %v521 = vsub.f32 0.0, %v520
      %v522 = vsel %vm381, %v521, -inf
      %523 = vmax.xlane.f32.xlu0 %v522
      %v524 = vpop.xlane.xlu0 %523
      %v525 = vsub.f32 %v521, %v524
      %v526 = vmul.f32 %v525, 1.442695
      %v527 = vpow.pop %v526
      %v528 = vsel %vm381, %v527, 0.0
      %529 = vadd.xlane.f32.xlu0 %v528
      %v530 = vpop.xlane.xlu0 %529
      %v531 = vlog2.pop %v530
      %v532 = vmul.f32 %v531, 0.6931472
      %v533 = vsub.f32 %v525, %v532
      %v534 = vrcp.pop %v530
      %v535 = vmul.f32 %v527, %v534
      %v536 = vsub.f32 0.0, %v378
      %v537 = vmul.f32 %v536, %v533
      %v538 = vsel %vm381, %v537, 0.0
      %539 = vadd.xlane.f32.xlu0 %v538
      %v540 = vpop.xlane.xlu0 %539
      %v541 = vrot.slane %v540, 4
      %v542 = vadd.f32 %v540, %v541
      %v543 = vrot.slane %v542, 2
      %v544 = vadd.f32 %v542, %v543
      %v545 = vrot.slane %v544, 1
      %v546 = vadd.f32 %v544, %v545
      %v547 = vrcp.pop 32.0
      %v548 = vmul.f32 32.0, %v547
      %v549 = vsub.f32 1.0, %v548
      %v550 = vmul.f32 %v547, %v549
      %v551 = vadd.f32 %v547, %v550
      %vm552 = vweird.f32 %v547
      %v553 = vsel %vm552, %v547, %v551
      %v554 = vmul.f32 %v546, %v553
      %v555 = vmul.f32 %v373, %v373
      %v556 = vmul.f32 %v374, %v374
      %v558 = vsel %vm434, %v555, 0
      %v561 = vsel %vm434, %v556, 0
      %563 = vmatpush.msra.mxu0 0.0
      %564 = vmatpush.msra.mxu0 0.0
      %565 = vmatpush.msra.mxu0 0.0
      %566 = vmatpush.msra.mxu0 0.0
      %567 = vmatpush.msra.mxu0 0.0
      %568 = vmatpush.msra.mxu0 0.0
      %569 = vmatpush.msra.mxu0 0.0
      %570 = vmatpush.msra.mxu0 0.0
      %571 = vmatpush.msra.mxu0 0.0
      %572 = vmatpush.msra.mxu0 0.0
      %573 = vmatpush.msra.mxu0 0.0
      %574 = vmatpush.msra.mxu0 0.0
      %575 = vmatpush.msra.mxu0 1.0
      %576 = vmatpush.msra.mxu0 1.0
      %577 = vmatpush.msra.mxu0 1.0
      %578 = vmatpush.msra.mxu0 1.0
      %579 = vmatmul.f32.gmra.mxu0 %v558
      %v580 = vpop.f32.mrf.mxu0
      %v581 = vadd.f32 0.0, %v580
      %582 = vmatmul.f32.gmra.mxu0 %v561
      %v583 = vpop.f32.mrf.mxu0
      %v584 = vadd.f32 0.0, %v583
      %585 = vdwg.mxu0
      %v586 = vmul.f32 %v372, %v372
      %v588 = vsel %vm434, %v586, 0
      %590 = vmatpush.xpose.msra.mxu0 0.0
      %591 = vmatpush.xpose.msra.mxu0 0.0
      %592 = vmatpush.xpose.msra.mxu0 0.0
      %593 = vmatpush.xpose.msra.mxu0 0.0
      %594 = vmatpush.xpose.msra.mxu0 0.0
      %595 = vmatpush.xpose.msra.mxu0 0.0
      %596 = vmatpush.xpose.msra.mxu0 0.0
      %597 = vmatpush.xpose.msra.mxu0 0.0
      %598 = vmatpush.xpose.msra.mxu0 0.0
      %599 = vmatpush.xpose.msra.mxu0 0.0
      %600 = vmatpush.xpose.msra.mxu0 0.0
      %601 = vmatpush.xpose.msra.mxu0 0.0
      %602 = vmatpush.xpose.msra.mxu0 0.0
      %603 = vmatpush.xpose.msra.mxu0 0.0
      %604 = vmatpush.xpose.msra.mxu0 0.0
      %605 = vmatpush.xpose.msra.mxu0 %v588
      %606 = vmatmul.f32.gmra.mxu0 %v460
      %v607 = vpop.f32.mrf.mxu0
      %v608 = vadd.f32 0.0, %v607
      %609 = vdwg.mxu0
      %v611 = vsel %vm434, %v373, 0
      %v614 = vsel %vm434, %v374, 0
      %v617 = vsel %vm434, %v372, 0
      %619 = vmatpush.xpose.msra.mxu0 0.0
      %620 = vmatpush.xpose.msra.mxu0 0.0
      %621 = vmatpush.xpose.msra.mxu0 0.0
      %622 = vmatpush.xpose.msra.mxu0 0.0
      %623 = vmatpush.xpose.msra.mxu0 0.0
      %624 = vmatpush.xpose.msra.mxu0 0.0
      %625 = vmatpush.xpose.msra.mxu0 0.0
      %626 = vmatpush.xpose.msra.mxu0 0.0
      %627 = vmatpush.xpose.msra.mxu0 0.0
      %628 = vmatpush.xpose.msra.mxu0 0.0
      %629 = vmatpush.xpose.msra.mxu0 0.0
      %630 = vmatpush.xpose.msra.mxu0 0.0
      %631 = vmatpush.xpose.msra.mxu0 0.0
      %632 = vmatpush.xpose.msra.mxu0 0.0
      %633 = vmatpush.xpose.msra.mxu0 0.0
      %634 = vmatpush.xpose.msra.mxu0 %v617
      %635 = vmatmul.f32.gmra.mxu0 %v611
      %v636 = vpop.f32.mrf.mxu0
      %v637 = vadd.f32 0.0, %v636
      %638 = vmatmul.f32.gmra.mxu0 %v614
      %v639 = vpop.f32.mrf.mxu0
      %v640 = vadd.f32 0.0, %v639
      %641 = vdwg.mxu0
      %643 = vset.pattern.permute.xlu0 0
      %644 = vperm.xlu0 %643, %v581
      %v645 = vpop.permute.xlu0 %644
      %648 = vset.pattern.permute.xlu0 0
      %649 = vperm.xlu0 %648, %v584
      %v650 = vpop.permute.xlu0 %649
      %v652 = vperm.slane %v608, 0
      %v653 = vadd.f32 %v645, %v652
      %v654 = vadd.f32 %v650, %v652
      %v655 = vmul.f32 %v637, 2.0
      %v656 = vmul.f32 %v640, 2.0
      %v657 = vsub.f32 %v653, %v655
      %v658 = vsub.f32 %v654, %v656
      %v659 = vmax.f32 %v657, 0.0
      %v660 = vmax.f32 %v658, 0.0
      %v661 = vsub.f32 0.0, %v659
      %v662 = vsub.f32 0.0, %v660
      %v663 = vsel %vm381, %v661, -inf
      %664 = vmax.xlane.f32.xlu0 %v663
      %v665 = vpop.xlane.xlu0 %664
      %vm666 = vcmask 27648
      %v667 = vsel %vm666, %v662, -inf
      %668 = vmax.xlane.f32.xlu0 %v667
      %v669 = vpop.xlane.xlu0 %668
      %v670 = vsub.f32 %v661, %v665
      %v671 = vsub.f32 %v662, %v669
      %v672 = vmul.f32 %v670, 1.442695
      %v673 = vpow.pop %v672
      %v674 = vmul.f32 %v671, 1.442695
      %v675 = vpow.pop %v674
      %v676 = vsel %vm381, %v673, 0.0
      %677 = vadd.xlane.f32.xlu0 %v676
      %v678 = vpop.xlane.xlu0 %677
      %v679 = vsel %vm666, %v675, 0.0
      %680 = vadd.xlane.f32.xlu0 %v679
      %v681 = vpop.xlane.xlu0 %680
      %v682 = vlog2.pop %v678
      %v683 = vmul.f32 %v682, 0.6931472
      %v684 = vlog2.pop %v681
      %v685 = vmul.f32 %v684, 0.6931472
      %v686 = vsub.f32 %v670, %v683
      %v687 = vsub.f32 %v671, %v685
      %v688 = vsub.f32 0.0, %v379
      %v689 = vsub.f32 0.0, %v380
      %v690 = vmul.f32 %v688, %v686
      %v691 = vmul.f32 %v689, %v687
      %v692 = vsel %vm381, %v690, 0.0
      %693 = vadd.xlane.f32.xlu0 %v692
      %v694 = vpop.xlane.xlu0 %693
      %v695 = vsel %vm666, %v691, 0.0
      %696 = vadd.xlane.f32.xlu0 %v695
      %v697 = vpop.xlane.xlu0 %696
      %vm698 = vcmask 1043456
      %v699 = vsel %vm698, %v697, 0.0
      %v700 = vadd.f32 %v694, %v699
      %v701 = vrot.slane %v700, 4
      %v702 = vadd.f32 %v700, %v701
      %v703 = vrot.slane %v702, 2
      %v704 = vadd.f32 %v702, %v703
      %v705 = vrot.slane %v704, 1
      %v706 = vadd.f32 %v704, %v705
      %v707 = vrcp.pop 48.0
      %v708 = vmul.f32 48.0, %v707
      %v709 = vsub.f32 1.0, %v708
      %v710 = vmul.f32 %v707, %v709
      %v711 = vadd.f32 %v707, %v710
      %vm712 = vweird.f32 %v707
      %v713 = vsel %vm712, %v707, %v711
      %v714 = vmul.f32 %v706, %v713
      %v715 = vadd.f32 %v535, 0.001
      %v716 = vlog2.pop %v715
      %v717 = vmul.f32 %v716, 0.6931472
      %v718 = vmul.f32 %v535, %v717
      %v719 = vsel %vm381, %v718, 0.0
      %720 = vadd.xlane.f32.xlu0 %v719
      %v721 = vpop.xlane.xlu0 %720
      %v722 = vsub.f32 0.0, %v721
      %v723 = vmax.f32 %v722, 0.0
      %v724 = vadd.f32 %v432, 0.001
      %v725 = vlog2.pop %v724
      %v726 = vmul.f32 %v725, 0.6931472
      %v727 = vmul.f32 %v432, %v726
      %v728 = vsel %vm381, %v727, 0.0
      %729 = vadd.xlane.f32.xlu0 %v728
      %v730 = vpop.xlane.xlu0 %729
      %v731 = vsub.f32 0.0, %v730
      %v732 = vmax.f32 %v731, 0.0
      %v733 = vadd.f32 %v723, 1.0
      %v734 = vrcp.pop %v733
      %v735 = vmul.f32 %v533, %v734
      %v736 = vadd.f32 %v732, 1.0
      %v737 = vrcp.pop %v736
      %v738 = vmul.f32 %v432, %v737
      %v739 = vadd.f32 %v735, %v738
      %v740 = vmul.f32 %v739, 0.5
      %v741 = vlaneseq
      %v742 = vand.u32 %v741, 127
      %v743 = vsel %vm381, %v740, -inf
      %744 = vmax.xlane.f32.xlu0 %v743
      %v745 = vpop.xlane.xlu0 %744
      %vm746 = vcmp.eq.f32.partialorder %v740, %v745
      %v747 = vsel %vm746, %v742, 4
      %v748 = vsel %vm381, %v747, 2147483647
      %v749 = vand.u32 %v748, 65535
      %v750 = vshra.s32 %v748, 16
      %v751 = vcvt.s32.f32 %v749
      %v752 = vcvt.s32.f32 %v750
      %753 = vmin.xlane.f32.xlu0 %v752
      %v754 = vpop.xlane.xlu0 %753
      %vm755 = vcmp.eq.f32.partialorder %v752, %v754
      %v756 = vsel %vm755, %v751, inf
      %757 = vmin.xlane.f32.xlu0 %v756
      %v758 = vpop.xlane.xlu0 %757
      %v759 = vcvt.f32.s32 %v758
      %v760 = vcvt.f32.s32 %v754
      %v761 = vshll.u32 %v760, 16
      %v762 = vadd.s32 %v761, %v759
      %vm763 = vcmp.eq.s32.totalorder %v742, %v762
      %v764 = vsel %vm763, 1, 0
      %v765 = vcvt.s32.f32 %v764
      %v767 = vsel %vm381, %v765, 0
      %v769 = vsel %vm698, %v370, 0
      %771 = vmatpush.msra.mxu0 0.0
      %772 = vmatpush.msra.mxu0 0.0
      %773 = vmatpush.msra.mxu0 0.0
      %774 = vmatpush.msra.mxu0 0.0
      %775 = vmatpush.msra.mxu0 0.0
      %776 = vmatpush.msra.mxu0 0.0
      %777 = vmatpush.msra.mxu0 0.0
      %778 = vmatpush.msra.mxu0 0.0
      %779 = vmatpush.msra.mxu0 0.0
      %780 = vmatpush.msra.mxu0 0.0
      %781 = vmatpush.msra.mxu0 0.0
      %782 = vmatpush.msra.mxu0 0.0
      %783 = vmatpush.msra.mxu0 0.0
      %784 = vmatpush.msra.mxu0 0.0
      %785 = vmatpush.msra.mxu0 0.0
      %786 = vmatpush.msra.mxu0 %v769
      %787 = vmatmul.f32.gmra.mxu0 %v767
      %v788 = vpop.f32.mrf.mxu0
      %v789 = vadd.f32 0.0, %v788
      %790 = vdwg.mxu0
      %v791 = vsub.f32 1.0, %v765
      %v792 = vmul.f32 %v740, %v791
      %v794 = vsel %vm381, %v792, 0
      %796 = vmatpush.msra.mxu0 0.0
      %797 = vmatpush.msra.mxu0 0.0
      %798 = vmatpush.msra.mxu0 0.0
      %799 = vmatpush.msra.mxu0 0.0
      %800 = vmatpush.msra.mxu0 0.0
      %801 = vmatpush.msra.mxu0 0.0
      %802 = vmatpush.msra.mxu0 0.0
      %803 = vmatpush.msra.mxu0 0.0
      %804 = vmatpush.msra.mxu0 0.0
      %805 = vmatpush.msra.mxu0 0.0
      %806 = vmatpush.msra.mxu0 0.0
      %807 = vmatpush.msra.mxu0 0.0
      %808 = vmatpush.msra.mxu0 0.0
      %809 = vmatpush.msra.mxu0 0.0
      %810 = vmatpush.msra.mxu0 0.0
      %811 = vmatpush.msra.mxu0 %v769
      %812 = vmatmul.f32.gmra.mxu0 %v794
      %v813 = vpop.f32.mrf.mxu0
      %v814 = vadd.f32 0.0, %v813
      %815 = vdwg.mxu0
      %v816 = vmul.f32 %v789, %v789
      %v818 = vsel %vm434, %v816, 0
      %820 = vmatpush.msra.mxu0 0.0
      %821 = vmatpush.msra.mxu0 0.0
      %822 = vmatpush.msra.mxu0 0.0
      %823 = vmatpush.msra.mxu0 0.0
      %824 = vmatpush.msra.mxu0 0.0
      %825 = vmatpush.msra.mxu0 0.0
      %826 = vmatpush.msra.mxu0 0.0
      %827 = vmatpush.msra.mxu0 0.0
      %828 = vmatpush.msra.mxu0 0.0
      %829 = vmatpush.msra.mxu0 0.0
      %830 = vmatpush.msra.mxu0 0.0
      %831 = vmatpush.msra.mxu0 0.0
      %832 = vmatpush.msra.mxu0 1.0
      %833 = vmatpush.msra.mxu0 1.0
      %834 = vmatpush.msra.mxu0 1.0
      %835 = vmatpush.msra.mxu0 1.0
      %836 = vmatmul.f32.gmra.mxu0 %v818
      %v837 = vpop.f32.mrf.mxu0
      %v838 = vadd.f32 0.0, %v837
      %839 = vdwg.mxu0
      %v840 = vmul.f32 %v814, %v814
      %v842 = vsel %vm434, %v840, 0
      %844 = vmatpush.xpose.msra.mxu0 0.0
      %845 = vmatpush.xpose.msra.mxu0 0.0
      %846 = vmatpush.xpose.msra.mxu0 0.0
      %847 = vmatpush.xpose.msra.mxu0 0.0
      %848 = vmatpush.xpose.msra.mxu0 0.0
      %849 = vmatpush.xpose.msra.mxu0 0.0
      %850 = vmatpush.xpose.msra.mxu0 0.0
      %851 = vmatpush.xpose.msra.mxu0 0.0
      %852 = vmatpush.xpose.msra.mxu0 0.0
      %853 = vmatpush.xpose.msra.mxu0 0.0
      %854 = vmatpush.xpose.msra.mxu0 0.0
      %855 = vmatpush.xpose.msra.mxu0 0.0
      %856 = vmatpush.xpose.msra.mxu0 0.0
      %857 = vmatpush.xpose.msra.mxu0 0.0
      %858 = vmatpush.xpose.msra.mxu0 0.0
      %859 = vmatpush.xpose.msra.mxu0 %v842
      %860 = vmatmul.f32.gmra.mxu0 %v460
      %v861 = vpop.f32.mrf.mxu0
      %v862 = vadd.f32 0.0, %v861
      %863 = vdwg.mxu0
      %v865 = vsel %vm434, %v789, 0
      %v868 = vsel %vm434, %v814, 0
      %870 = vmatpush.xpose.msra.mxu0 0.0
      %871 = vmatpush.xpose.msra.mxu0 0.0
      %872 = vmatpush.xpose.msra.mxu0 0.0
      %873 = vmatpush.xpose.msra.mxu0 0.0
      %874 = vmatpush.xpose.msra.mxu0 0.0
      %875 = vmatpush.xpose.msra.mxu0 0.0
      %876 = vmatpush.xpose.msra.mxu0 0.0
      %877 = vmatpush.xpose.msra.mxu0 0.0
      %878 = vmatpush.xpose.msra.mxu0 0.0
      %879 = vmatpush.xpose.msra.mxu0 0.0
      %880 = vmatpush.xpose.msra.mxu0 0.0
      %881 = vmatpush.xpose.msra.mxu0 0.0
      %882 = vmatpush.xpose.msra.mxu0 0.0
      %883 = vmatpush.xpose.msra.mxu0 0.0
      %884 = vmatpush.xpose.msra.mxu0 0.0
      %885 = vmatpush.xpose.msra.mxu0 %v868
      %886 = vmatmul.f32.gmra.mxu0 %v865
      %v887 = vpop.f32.mrf.mxu0
      %v888 = vadd.f32 0.0, %v887
      %889 = vdwg.mxu0
      %891 = vset.pattern.permute.xlu0 0
      %892 = vperm.xlu0 %891, %v838
      %v893 = vpop.permute.xlu0 %892
      %v895 = vperm.slane %v862, 0
      %v896 = vadd.f32 %v893, %v895
      %v897 = vmul.f32 %v888, 2.0
      %v898 = vsub.f32 %v896, %v897
      %v899 = vmax.f32 %v898, 0.0
      %v900 = vtanh.pop %v899
      %vm901 = vcmask 64512
      %v902 = vsel %vm901, %v900, 0.0
      %903 = vadd.xlane.f32.xlu0 %v902
      %v904 = vpop.xlane.xlu0 %903
      %v905 = vrot.slane %v904, 4
      %v906 = vadd.f32 %v904, %v905
      %v907 = vrot.slane %v906, 2
      %v908 = vadd.f32 %v906, %v907
      %v909 = vrot.slane %v908, 1
      %v910 = vadd.f32 %v908, %v909
      %v911 = vmul.f32 %v910, %v429
      %v912 = vsub.f32 1.0, %v911
      %v913 = vmul.f32 %v714, 0.1
      %v914 = vadd.f32 %v913, %v430
      %v915 = vadd.f32 %v914, %v912
      %v916 = vadd.f32 %v915, %v554
      %917 = vst.msk [vmem:[%s369] sm:$0xff] %vm381, %v765
      %s918 = scalar_lea.vmem %s369, 8
      %919 = vst.msk [vmem:[%s918] sm:$0xff] %vm381, %v535
      %s920 = scalar_lea.vmem %s369, 16
      %921 = vst.msk [vmem:[%s920] sm:$0xff] %vm381, %v916
      %p922 = scmp.lt.s32.totalorder %s18, 3
      %s923 = scalar_select %p922, %s18, 3
      %s924 = smul.addr %s923, 3
      %s925 = smul.addr %s924, 8
      %s926 = scalar_lea.vmem %s7, %s925
      // Predicated region
      $region49: #{tpu_custom_call.1} parent=47 // pred_check
        %p927 = pneg %p213
      $region50: #{tpu_custom_call.1} parent=47 // pred_check_branch
        %929 = sbr.rel (%p927) target = $region52
      $region51: #{tpu_custom_call.1} parent=47 // pred_region
        _
      $region52: #{tpu_custom_call.1} parent=47 // pred_fallthru
        _
    $region48: #{tpu_custom_call.1} parent=5 // pred_fallthru
      _
    %p930 = scmp.le.s32.totalorder 2, %s13
    // Predicated region
    $region53: #{tpu_custom_call.1} parent=5 // pred_check
      %p931 = pneg %p930
    $region54: #{tpu_custom_call.1} parent=5 // pred_check_branch
      %933 = sbr.rel (%p931) target = $region56
    $region55: #{tpu_custom_call.1} parent=5 // pred_region
      %s934 = ssub.s32 %s13, 2
      // Predicated region
      $region57: #{tpu_custom_call.1} parent=55 // pred_check
        %p935 = pneg %p219
      $region58: #{tpu_custom_call.1} parent=55 // pred_check_branch
        %937 = sbr.rel (%p935) target = $region60
      $region59: #{tpu_custom_call.1} parent=55 // pred_region
        %p938 = scmp.lt.s32.totalorder %s19, 3
        %s939 = scalar_select %p938, %s19, 3
        %s940 = smul.addr %s939, 3
        %s941 = smul.addr %s940, 8
        %s942 = scalar_lea.vmem %s7, %s941
      $region60: #{tpu_custom_call.1} parent=55 // pred_fallthru
        _
    $region56: #{tpu_custom_call.1} parent=5 // pred_fallthru
      _
  $region6: #{tpu_custom_call.1} parent=0 // loop_footer
    %s17 = sadd.s32 1, %s13
  $region7: #{tpu_custom_call.1} parent=0 // loop_footer_branch
    %12 = sbr.rel target = $region3
  $region8: #{tpu_custom_call.1} parent=0 // loop_exit
    _

</llo_original>
